<compile_context>
chip_gen: v7x
topology: tpu7x:2x2x1
jax: 0.10.0
libtpu: 0.0.40
codegen_flags: <defaults>
</compile_context>

<pallas_src>
import math

import jax
import jax.numpy as jnp
import numpy as np
from jax.experimental import pallas as pl
from jax.experimental.pallas import tpu as pltpu

_LANES = 128


def _round_up(n, m):
    return ((n + m - 1) // m) * m


def _pe_kernel(row_ref, row_freq_ref, base_phase_ref, o_ref):
    # row_ref:        (TILE_R, 1)       f32  global flattened-row index (host f32).
    # row_freq_ref:   (1, N_LANES)      f32  per-lane multiplier of the flat row index.
    # base_phase_ref: (1, N_LANES)      f32  per-lane constant: packed-position offset
    #                                        * freq, plus pi/2 on odd embed columns so
    #                                        one sin() also produces the cos().
    # o_ref:          (TILE_R, N_LANES) f32  lane-dense output tile (full-width stores).
    o_ref[...] = jnp.sin(row_ref[...] * row_freq_ref[...] + base_phase_ref[...])


def build_position_encoding_table(embed_size, max_len=100):
    """Builds pe of shape (1, max_len, embed_size), equal to the PyTorch buffer."""
    assert embed_size % 2 == 0, "embed_size must be even (as in the PyTorch module)"
    e = embed_size

    # Output layout: (n_rows, n_lanes), flattened & lane-dense.
    if e < _LANES and _LANES % e == 0:
        k = _LANES // e          # positions packed per 128-lane output row
        n_lanes = _LANES
    elif e % _LANES == 0:
        k = 1
        n_lanes = e
    else:
        # General fallback: pad embed dim to a lane multiple and slice it off later.
        k = 1
        n_lanes = _round_up(e, _LANES)
    n_rows = pl.cdiv(max_len, k)

    # Row tiling: single block for small tables (block == full dims, (8,128) rule
    # does not apply), otherwise >=2 parallel grid steps (v7x megacore) with the
    # double-buffered output tile capped at ~8 MiB total.
    max_tile_rows = max(8, (((8 * 1024 * 1024) // (2 * 4 * n_lanes)) // 8) * 8)
    if n_rows <= 64:
        tile_r = n_rows
        rows_pad = n_rows
    else:
        tile_r = min(_round_up(pl.cdiv(n_rows, 2), 8), max_tile_rows)
        rows_pad = _round_up(n_rows, tile_r)
    grid = (rows_pad // tile_r,)

    # Per-lane constants (host, float32 like the PyTorch reference):
    #   lane l -> embed column c = l % E, packed position offset p_off = l // E
    #   angle(row, l) = (row*k + p_off) * freq[c] + phase[c]
    #                 = row * (k*freq[c]) + (p_off*freq[c] + phase[c])
    lane = np.arange(n_lanes)
    col = lane % e
    pos_off = (lane // e).astype(np.float32)
    even_col = (col - (col % 2)).astype(np.float32)
    freq = np.exp(even_col * np.float32(-(math.log(10000.0) / e))).astype(np.float32)
    phase = np.where(col % 2 == 1, np.float32(math.pi / 2), np.float32(0.0))
    valid = lane < e * k                      # zero padded lanes (fallback case only)
    freq = np.where(valid, freq, 0.0).astype(np.float32)
    phase = np.where(valid, phase, 0.0).astype(np.float32)
    row_freq = (np.float32(k) * freq).reshape(1, n_lanes)
    base_phase = (pos_off * freq + phase).astype(np.float32).reshape(1, n_lanes)
    row_idx = np.arange(rows_pad, dtype=np.float32).reshape(rows_pad, 1)

    n_elems = rows_pad * n_lanes
    cost = pl.CostEstimate(
        flops=2 * n_elems,          # one mul + one add per element
        transcendentals=n_elems,    # one sin per element (likely a VALU polynomial;
                                    # advisory only)
        bytes_accessed=n_elems * 4 + rows_pad * 4 + 2 * n_lanes * 4,
    )

    pe_flat = pl.pallas_call(
        _pe_kernel,
        out_shape=jax.ShapeDtypeStruct((rows_pad, n_lanes), jnp.float32),
        grid=grid,
        in_specs=[
            pl.BlockSpec((tile_r, 1), lambda i: (i, 0)),
            pl.BlockSpec((1, n_lanes), lambda i: (0, 0)),
            pl.BlockSpec((1, n_lanes), lambda i: (0, 0)),
        ],
        out_specs=pl.BlockSpec((tile_r, n_lanes), lambda i: (i, 0)),
        compiler_params=pltpu.CompilerParams(dimension_semantics=("parallel",)),
        cost_estimate=cost,
    )(jnp.asarray(row_idx), jnp.asarray(row_freq), jnp.asarray(base_phase))

    if k > 1:
        pe = pe_flat.reshape(rows_pad * k, e)     # contiguous un-flatten (cheap)
    elif n_lanes != e:
        pe = pe_flat[:, :e]                       # rare fallback only
    else:
        pe = pe_flat
    pe = pe[:max_len]
    return pe.reshape(1, max_len, e)


class PositionEncoding:
    """JAX/Pallas equivalent of the PyTorch module: the table is built once at
    init (register_buffer semantics); forward is a free slice of the cached table."""

    def __init__(self, embed_size, max_len=100):
        self.embed_size = embed_size
        self.max_len = max_len
        self.pe = build_position_encoding_table(embed_size, max_len)  # (1, max_len, E)

    def __call__(self, x):
        return self.forward(x)

    def forward(self, x):
        seq_len = x.shape[1]
        assert seq_len <= self.max_len, "sequence length exceeds max_len"
        # TODO(synk): in a full model, fuse the `x + pe` add into the consumer
        # kernel instead of materializing the slice here.
        return self.pe[:, :seq_len]


def _numpy_reference(seq_len, embed_size):
    pe = np.zeros((seq_len, embed_size), dtype=np.float32)
    position = np.arange(0, seq_len, dtype=np.float32)[:, None]
    div_term = np.exp(
        np.arange(0, embed_size, 2, dtype=np.float32)
        * -(math.log(10000.0) / embed_size)
    )
    pe[:, 0::2] = np.sin(position * div_term)
    pe[:, 1::2] = np.cos(position * div_term)
    return pe[None]


if __name__ == "__main__":
    key = jax.random.PRNGKey(0)
    batch, seq, embed, max_len = 2, 8, 32, 100
    # x is only consulted for its sequence length, as in the PyTorch module.
    x = jax.random.normal(key, (batch, seq, embed), dtype=jnp.float32)

    module = PositionEncoding(embed_size=embed, max_len=max_len)
    out = module(x)                      # free slice of the cached table
    out = jax.block_until_ready(out)

    assert out.shape == (1, seq, embed)
    np.testing.assert_allclose(np.asarray(out), _numpy_reference(seq, embed),
                               rtol=1e-5, atol=1e-5)
    # Full-buffer check against the PyTorch register_buffer semantics.
    np.testing.assert_allclose(np.asarray(module.pe), _numpy_reference(max_len, embed),
                               rtol=1e-5, atol=1e-5)
    print("KERNEL_OK")
</pallas_src>

<mosaic_0001>
module attributes {stable_mosaic.version = 11 : i64} {
  func.func @_pe_kernel(%arg0: i32, %arg1: memref<25x1xf32, #tpu.memory_space<vmem>>, %arg2: memref<1x128xf32, #tpu.memory_space<vmem>>, %arg3: memref<1x128xf32, #tpu.memory_space<vmem>>, %arg4: memref<25x128xf32, #tpu.memory_space<vmem>>) attributes {dimension_semantics = [#tpu.dimension_semantics<parallel>], iteration_bounds = array<i64: 1>, scalar_prefetch = 0 : i64, scratch_operands = 0 : i64, tpu.core_type = #tpu.core_type<tc>, window_params = [{transform_indices = @transform_0, window_bounds = array<i64: 25, 1>}, {pipeline_mode = #tpu.pipeline_mode<synchronous>, transform_indices = @transform_1, window_bounds = array<i64: 1, 128>}, {pipeline_mode = #tpu.pipeline_mode<synchronous>, transform_indices = @transform_2, window_bounds = array<i64: 1, 128>}, {transform_indices = @transform_3, window_bounds = array<i64: 25, 128>}]} {
    %c0 = arith.constant 0 : index
    %c0_0 = arith.constant 0 : index
    %0 = vector.load %arg1[%c0, %c0_0] : memref<25x1xf32, #tpu.memory_space<vmem>>, vector<25x1xf32>
    %c0_1 = arith.constant 0 : index
    %c0_2 = arith.constant 0 : index
    %1 = vector.load %arg2[%c0_1, %c0_2] : memref<1x128xf32, #tpu.memory_space<vmem>>, vector<1x128xf32>
    %2 = vector.broadcast %0 : vector<25x1xf32> to vector<25x128xf32>
    %3 = vector.broadcast %1 : vector<1x128xf32> to vector<25x128xf32>
    %4 = arith.mulf %2, %3 : vector<25x128xf32>
    %c0_3 = arith.constant 0 : index
    %c0_4 = arith.constant 0 : index
    %5 = vector.load %arg3[%c0_3, %c0_4] : memref<1x128xf32, #tpu.memory_space<vmem>>, vector<1x128xf32>
    %6 = vector.broadcast %5 : vector<1x128xf32> to vector<25x128xf32>
    %7 = arith.addf %4, %6 : vector<25x128xf32>
    %8 = math.sin %7 : vector<25x128xf32>
    %c0_5 = arith.constant 0 : index
    %c0_6 = arith.constant 0 : index
    %9 = vector.load %arg4[%c0_5, %c0_6] : memref<25x128xf32, #tpu.memory_space<vmem>>, vector<25x128xf32>
    tpu.vector_store %arg4[%c0_5, %c0_6], %8 {strides = array<i32>} : memref<25x128xf32, #tpu.memory_space<vmem>>, vector<25x128xf32>,
    return
  }
  func.func @transform_0(%arg0: i32) -> (i32, i32) {
    %c0_i32 = arith.constant 0 : i32
    %c0_i32_0 = arith.constant 0 : i32
    return %arg0, %c0_i32 : i32, i32
  }
  func.func @transform_1(%arg0: i32) -> (i32, i32) {
    %c0_i32 = arith.constant 0 : i32
    %c0_i32_0 = arith.constant 0 : i32
    %c0_i32_1 = arith.constant 0 : i32
    return %c0_i32, %c0_i32_0 : i32, i32
  }
  func.func @transform_2(%arg0: i32) -> (i32, i32) {
    %c0_i32 = arith.constant 0 : i32
    %c0_i32_0 = arith.constant 0 : i32
    %c0_i32_1 = arith.constant 0 : i32
    return %c0_i32, %c0_i32_0 : i32, i32
  }
  func.func @transform_3(%arg0: i32) -> (i32, i32) {
    %c0_i32 = arith.constant 0 : i32
    %c0_i32_0 = arith.constant 0 : i32
    return %arg0, %c0_i32 : i32, i32
  }
}

</mosaic_0001>

<llo_original>
// kernel: tpu_custom_call.1
$region0: #{tpu_custom_call.1}
  #allocation0 [shape = 'u32[]', space=smem, size = 0x4, offset = 0x4, fixed_abs, tag = 'smem constant byte address 0x4 - core index']
  #allocation1 [shape = 'u32[144,128]{1,0:T(1,128)}', space=vmem, size = 0x12000, scoped, tag = 'internal scratch']
  %s0 = inlined_call_operand.vmem [shape: f32[25,1], index: 0, kind: input, shape index: {}]
  %s1 = inlined_call_operand.vmem [shape: f32[1,128], index: 1, kind: input, shape index: {}]
  %s2 = inlined_call_operand.vmem [shape: f32[1,128], index: 2, kind: input, shape index: {}]
  %s3 = inlined_call_operand.hbm [shape: f32[25,128], index: 3, kind: output, shape index: {}]
  %s4 = sld [smem:[#allocation0]]
  $region22: #{tpu_custom_call.1} parent=0
    _
  %s6 = ssub.s32 1, %s4
  %s7 = scalar_select 0, %s6, %s4
  $region1: #{tpu_custom_call.1} parent=0
    #allocation2 [shape = 'u8[16384]{0}', space=vmem, size = 0x4000, scoped, tag = 'output window, operand 0, single buffered']
    #allocation3 [shape = 's32[1]{0}', space=sflag, size = 0x4, scoped, tag = 'scoped memory for tpu_custom_call.1']
    %8 = vsyncpa [#allocation3], 0
    // Predicated region
    $region2: #{tpu_custom_call.1} parent=1 // pred_check
      _
    $region3: #{tpu_custom_call.1} parent=1 // pred_check_branch
      %10 = sbr.rel (0) target = $region5
    $region4: #{tpu_custom_call.1} parent=1 // pred_region
      _
    $region5: #{tpu_custom_call.1} parent=1 // pred_fallthru
      _
    // Predicated region
    $region6: #{tpu_custom_call.1} parent=1 // pred_check
      _
    $region7: #{tpu_custom_call.1} parent=1 // pred_check_branch
      %12 = sbr.rel (0) target = $region9
    $region8: #{tpu_custom_call.1} parent=1 // pred_region
      _
    $region9: #{tpu_custom_call.1} parent=1 // pred_fallthru
      _
    // Predicated region
    $region10: #{tpu_custom_call.1} parent=1 // pred_check
      _
    $region11: #{tpu_custom_call.1} parent=1 // pred_check_branch
      %14 = sbr.rel (0) target = $region13
    $region12: #{tpu_custom_call.1} parent=1 // pred_region
      _
    $region13: #{tpu_custom_call.1} parent=1 // pred_fallthru
      _
    %v15 = vld [vmem:[%s0] sm:$0xff]
    %v16 = vld [vmem:[%s0 + $0x8] sm:$0xff]
    %v17 = vld [vmem:[%s0 + $0x10] sm:$0xff]
    %v18 = vld [vmem:[%s0 + $0x18] sm:$0x1]
    %v19 = vld [vmem:[%s1] sm:$0x1]
    %21 = vset.pattern.permute.xlu0 0
    %22 = vperm.xlu0 %21, %v15
    %v23 = vpop.permute.xlu0 %22
    %26 = vset.pattern.permute.xlu0 0
    %27 = vperm.xlu0 %26, %v16
    %v28 = vpop.permute.xlu0 %27
    %31 = vset.pattern.permute.xlu0 0
    %32 = vperm.xlu0 %31, %v17
    %v33 = vpop.permute.xlu0 %32
    %36 = vset.pattern.permute.xlu0 0
    %37 = vperm.xlu0 %36, %v18
    %v38 = vpop.permute.xlu0 %37
    %v41 = vlaneseq
    %v42 = vshrl.u32 %v41, 7
    %v43 = vsub.s32 0, %v42
    %v44 = vrot.slane %v19, %v43
    %v46 = vmul.f32 %v23, %v44
    %v47 = vmul.f32 %v28, %v44
    %v48 = vmul.f32 %v33, %v44
    %v49 = vmul.f32 %v38, %v44
    %v50 = vld [vmem:[%s2] sm:$0x1]
    %v52 = vlaneseq
    %v53 = vshrl.u32 %v52, 7
    %v54 = vsub.s32 0, %v53
    %v55 = vrot.slane %v50, %v54
    %v57 = vadd.f32 %v46, %v55
    %v58 = vadd.f32 %v47, %v55
    %v59 = vadd.f32 %v48, %v55
    %v60 = vadd.f32 %v49, %v55
    %v61 = vand.u32 2147483647, %v57
    %vm62 = vcmp.le.f32.partialorder %v61, 0.7853982
    %vm63 = vcmp.lt.s32.totalorder %v57, 0
    %v64 = vand.u32 %v57, 2139095040
    %v65 = vshrl.u32 %v64, 23
    %v66 = vsub.s32 %v65, 127
    %v67 = vand.u32 2147483647, %v57
    %v68 = vand.u32 %v67, 8388607
    %v69 = vor.u32 %v68, 8388608
    %v70 = vsub.s32 0, %v69
    %v71 = vadd.s32 %v66, 1
    %vm72 = vcmp.gt.s32.totalorder %v71, 0
    %v73 = vsel %vm72, %v71, 0
    %v74 = vshrl.u32 %v73, 5
    %v75 = vand.u32 %v73, 31
    %v76 = vsub.s32 32, %v75
    %v77 = vshrl.u32 683565275, %v76
    %v78 = vshll.u32 683565275, %v75
    %v79 = vshrl.u32 2475754826, %v76
    %v80 = vor.u32 %v78, %v79
    %v81 = vshll.u32 2475754826, %v75
    %v82 = vshrl.u32 2131351028, %v76
    %v83 = vor.u32 %v81, %v82
    %v84 = vshll.u32 2131351028, %v75
    %v85 = vshrl.u32 2102212464, %v76
    %v86 = vor.u32 %v84, %v85
    %v87 = vshll.u32 2102212464, %v75
    %v88 = vshrl.u32 920167782, %v76
    %v89 = vor.u32 %v87, %v88
    %v90 = vshll.u32 920167782, %v75
    %v91 = vshrl.u32 1326507024, %v76
    %v92 = vor.u32 %v90, %v91
    %vm93 = vcmp.lt.s32.totalorder %v74, 1
    %vm94 = vcmp.lt.s32.totalorder %v74, 2
    %vm95 = vcmp.lt.s32.totalorder %v74, 3
    %vm96 = vcmp.lt.s32.totalorder %v74, 4
    %v97 = vsel %vm93, %v77, %v80
    %v98 = vsel %vm96, %v86, 2102212464
    %v99 = vsel %vm95, %v83, %v98
    %v100 = vsel %vm94, %v97, %v99
    %v101 = vsel %vm93, %v80, %v83
    %v102 = vsel %vm96, %v89, 920167782
    %v103 = vsel %vm95, %v86, %v102
    %v104 = vsel %vm94, %v101, %v103
    %v105 = vsel %vm93, %v83, %v86
    %v106 = vsel %vm96, %v92, 1326507024
    %v107 = vsel %vm95, %v89, %v106
    %v108 = vsel %vm94, %v105, %v107
    %v109 = vshll.u32 %v69, 8
    %v110 = vmul.u32.u64.compose %v109, %v108
    %v111 = vextract.low.u32 %v110
    %v112 = vextract.high.u32 %v110
    %v113 = vmul.u32.u64.compose %v109, %v104
    %v114 = vextract.low.u32 %v113
    %v115 = vextract.high.u32 %v113
    %v116 = vmul.u32 %v109, %v100
    %v117 = vadd.s32 %v112, %v114
    %vm118 = vc.u32 %v112, %v114
    %v119 = vadd.s32 %v115, 1
    %v120 = vsel %vm118, %v119, %v115
    %v121 = vadd.s32 %v116, %v120
    %v122 = vadd.s32 %v121, 536870912
    %v123 = vshrl.u32 %v122, 30
    %v124 = vshll.u32 %v123, 30
    %v125 = vsub.s32 %v121, %v124
    %vm126 = vcmp.lt.s32.totalorder %v125, 0
    %v127 = vsub.s32 0, %v125
    %v128 = vsel %vm126, %v127, %v125
    %v129 = vclz %v128
    %v130 = vsub.s32 %v129, 2
    %vm131 = vcmp.gt.s32.totalorder 0, %v130
    %v132 = vsel %vm131, 0, %v130
    %v133 = vsub.s32 32, %v132
    %v134 = vshll.u32 %v125, %v132
    %v135 = vshrl.u32 %v117, %v133
    %v136 = vor.u32 %v134, %v135
    %v137 = vsub.s32 4294967266, %v132
    %v138 = vadd.s32 %v137, 127
    %v139 = vshll.u32 %v138, 23
    %v140 = vor.u32 4788187, %v139
    %v141 = vand.u32 2147483647, %v140
    %v143 = vcvt.s32.f32 %v136
    %v144 = vmul.f32 %v143, %v141
    %v145 = vxor.u32 %v144, 2147483648
    %v146 = vsel %vm63, %v145, %v144
    %v147 = vsub.s32 4, %v123
    %v148 = vsel %vm63, %v147, %v123
    %v149 = vsel %vm62, %v57, %v146
    %v150 = vsel %vm62, 0, %v148
    %v151 = vcosq.f32.pop %v149
    %v152 = vsinq.f32.pop %v149
    %vm153 = vweird.f32 %v57
    %v154 = vadd.s32 %v150, 3
    %v155 = vand.u32 %v154, 3
    %vm156 = vcmp.lt.s32.totalorder %v155, 2
    %vm157 = vcmp.eq.s32.totalorder %v155, 0
    %v158 = vxor.u32 %v152, 2147483648
    %v159 = vsel %vm157, %v151, %v158
    %vm160 = vcmp.eq.s32.totalorder %v155, 2
    %v161 = vxor.u32 %v151, 2147483648
    %v162 = vsel %vm160, %v161, %v152
    %v163 = vsel %vm156, %v159, %v162
    %v164 = vsel %vm153, nan, %v163
    %v165 = vand.u32 2147483647, %v58
    %vm166 = vcmp.le.f32.partialorder %v165, 0.7853982
    %vm167 = vcmp.lt.s32.totalorder %v58, 0
    %v168 = vand.u32 %v58, 2139095040
    %v169 = vshrl.u32 %v168, 23
    %v170 = vsub.s32 %v169, 127
    %v171 = vand.u32 2147483647, %v58
    %v172 = vand.u32 %v171, 8388607
    %v173 = vor.u32 %v172, 8388608
    %v174 = vsub.s32 0, %v173
    %v175 = vadd.s32 %v170, 1
    %vm176 = vcmp.gt.s32.totalorder %v175, 0
    %v177 = vsel %vm176, %v175, 0
    %v178 = vshrl.u32 %v177, 5
    %v179 = vand.u32 %v177, 31
    %v180 = vsub.s32 32, %v179
    %v181 = vshrl.u32 683565275, %v180
    %v182 = vshll.u32 683565275, %v179
    %v183 = vshrl.u32 2475754826, %v180
    %v184 = vor.u32 %v182, %v183
    %v185 = vshll.u32 2475754826, %v179
    %v186 = vshrl.u32 2131351028, %v180
    %v187 = vor.u32 %v185, %v186
    %v188 = vshll.u32 2131351028, %v179
    %v189 = vshrl.u32 2102212464, %v180
    %v190 = vor.u32 %v188, %v189
    %v191 = vshll.u32 2102212464, %v179
    %v192 = vshrl.u32 920167782, %v180
    %v193 = vor.u32 %v191, %v192
    %v194 = vshll.u32 920167782, %v179
    %v195 = vshrl.u32 1326507024, %v180
    %v196 = vor.u32 %v194, %v195
    %vm197 = vcmp.lt.s32.totalorder %v178, 1
    %vm198 = vcmp.lt.s32.totalorder %v178, 2
    %vm199 = vcmp.lt.s32.totalorder %v178, 3
    %vm200 = vcmp.lt.s32.totalorder %v178, 4
    %v201 = vsel %vm197, %v181, %v184
    %v202 = vsel %vm200, %v190, 2102212464
    %v203 = vsel %vm199, %v187, %v202
    %v204 = vsel %vm198, %v201, %v203
    %v205 = vsel %vm197, %v184, %v187
    %v206 = vsel %vm200, %v193, 920167782
    %v207 = vsel %vm199, %v190, %v206
    %v208 = vsel %vm198, %v205, %v207
    %v209 = vsel %vm197, %v187, %v190
    %v210 = vsel %vm200, %v196, 1326507024
    %v211 = vsel %vm199, %v193, %v210
    %v212 = vsel %vm198, %v209, %v211
    %v213 = vshll.u32 %v173, 8
    %v214 = vmul.u32.u64.compose %v213, %v212
    %v215 = vextract.low.u32 %v214
    %v216 = vextract.high.u32 %v214
    %v217 = vmul.u32.u64.compose %v213, %v208
    %v218 = vextract.low.u32 %v217
    %v219 = vextract.high.u32 %v217
    %v220 = vmul.u32 %v213, %v204
    %v221 = vadd.s32 %v216, %v218
    %vm222 = vc.u32 %v216, %v218
    %v223 = vadd.s32 %v219, 1
    %v224 = vsel %vm222, %v223, %v219
    %v225 = vadd.s32 %v220, %v224
    %v226 = vadd.s32 %v225, 536870912
    %v227 = vshrl.u32 %v226, 30
    %v228 = vshll.u32 %v227, 30
    %v229 = vsub.s32 %v225, %v228
    %vm230 = vcmp.lt.s32.totalorder %v229, 0
    %v231 = vsub.s32 0, %v229
    %v232 = vsel %vm230, %v231, %v229
    %v233 = vclz %v232
    %v234 = vsub.s32 %v233, 2
    %vm235 = vcmp.gt.s32.totalorder 0, %v234
    %v236 = vsel %vm235, 0, %v234
    %v237 = vsub.s32 32, %v236
    %v238 = vshll.u32 %v229, %v236
    %v239 = vshrl.u32 %v221, %v237
    %v240 = vor.u32 %v238, %v239
    %v241 = vsub.s32 4294967266, %v236
    %v242 = vadd.s32 %v241, 127
    %v243 = vshll.u32 %v242, 23
    %v244 = vor.u32 4788187, %v243
    %v245 = vand.u32 2147483647, %v244
    %v247 = vcvt.s32.f32 %v240
    %v248 = vmul.f32 %v247, %v245
    %v249 = vxor.u32 %v248, 2147483648
    %v250 = vsel %vm167, %v249, %v248
    %v251 = vsub.s32 4, %v227
    %v252 = vsel %vm167, %v251, %v227
    %v253 = vsel %vm166, %v58, %v250
    %v254 = vsel %vm166, 0, %v252
    %v255 = vcosq.f32.pop %v253
    %v256 = vsinq.f32.pop %v253
    %vm257 = vweird.f32 %v58
    %v258 = vadd.s32 %v254, 3
    %v259 = vand.u32 %v258, 3
    %vm260 = vcmp.lt.s32.totalorder %v259, 2
    %vm261 = vcmp.eq.s32.totalorder %v259, 0
    %v262 = vxor.u32 %v256, 2147483648
    %v263 = vsel %vm261, %v255, %v262
    %vm264 = vcmp.eq.s32.totalorder %v259, 2
    %v265 = vxor.u32 %v255, 2147483648
    %v266 = vsel %vm264, %v265, %v256
    %v267 = vsel %vm260, %v263, %v266
    %v268 = vsel %vm257, nan, %v267
    %v269 = vand.u32 2147483647, %v59
    %vm270 = vcmp.le.f32.partialorder %v269, 0.7853982
    %vm271 = vcmp.lt.s32.totalorder %v59, 0
    %v272 = vand.u32 %v59, 2139095040
    %v273 = vshrl.u32 %v272, 23
    %v274 = vsub.s32 %v273, 127
    %v275 = vand.u32 2147483647, %v59
    %v276 = vand.u32 %v275, 8388607
    %v277 = vor.u32 %v276, 8388608
    %v278 = vsub.s32 0, %v277
    %v279 = vadd.s32 %v274, 1
    %vm280 = vcmp.gt.s32.totalorder %v279, 0
    %v281 = vsel %vm280, %v279, 0
    %v282 = vshrl.u32 %v281, 5
    %v283 = vand.u32 %v281, 31
    %v284 = vsub.s32 32, %v283
    %v285 = vshrl.u32 683565275, %v284
    %v286 = vshll.u32 683565275, %v283
    %v287 = vshrl.u32 2475754826, %v284
    %v288 = vor.u32 %v286, %v287
    %v289 = vshll.u32 2475754826, %v283
    %v290 = vshrl.u32 2131351028, %v284
    %v291 = vor.u32 %v289, %v290
    %v292 = vshll.u32 2131351028, %v283
    %v293 = vshrl.u32 2102212464, %v284
    %v294 = vor.u32 %v292, %v293
    %v295 = vshll.u32 2102212464, %v283
    %v296 = vshrl.u32 920167782, %v284
    %v297 = vor.u32 %v295, %v296
    %v298 = vshll.u32 920167782, %v283
    %v299 = vshrl.u32 1326507024, %v284
    %v300 = vor.u32 %v298, %v299
    %vm301 = vcmp.lt.s32.totalorder %v282, 1
    %vm302 = vcmp.lt.s32.totalorder %v282, 2
    %vm303 = vcmp.lt.s32.totalorder %v282, 3
    %vm304 = vcmp.lt.s32.totalorder %v282, 4
    %v305 = vsel %vm301, %v285, %v288
    %v306 = vsel %vm304, %v294, 2102212464
    %v307 = vsel %vm303, %v291, %v306
    %v308 = vsel %vm302, %v305, %v307
    %v309 = vsel %vm301, %v288, %v291
    %v310 = vsel %vm304, %v297, 920167782
    %v311 = vsel %vm303, %v294, %v310
    %v312 = vsel %vm302, %v309, %v311
    %v313 = vsel %vm301, %v291, %v294
    %v314 = vsel %vm304, %v300, 1326507024
    %v315 = vsel %vm303, %v297, %v314
    %v316 = vsel %vm302, %v313, %v315
    %v317 = vshll.u32 %v277, 8
    %v318 = vmul.u32.u64.compose %v317, %v316
    %v319 = vextract.low.u32 %v318
    %v320 = vextract.high.u32 %v318
    %v321 = vmul.u32.u64.compose %v317, %v312
    %v322 = vextract.low.u32 %v321
    %v323 = vextract.high.u32 %v321
    %v324 = vmul.u32 %v317, %v308
    %v325 = vadd.s32 %v320, %v322
    %vm326 = vc.u32 %v320, %v322
    %v327 = vadd.s32 %v323, 1
    %v328 = vsel %vm326, %v327, %v323
    %v329 = vadd.s32 %v324, %v328
    %v330 = vadd.s32 %v329, 536870912
    %v331 = vshrl.u32 %v330, 30
    %v332 = vshll.u32 %v331, 30
    %v333 = vsub.s32 %v329, %v332
    %vm334 = vcmp.lt.s32.totalorder %v333, 0
    %v335 = vsub.s32 0, %v333
    %v336 = vsel %vm334, %v335, %v333
    %v337 = vclz %v336
    %v338 = vsub.s32 %v337, 2
    %vm339 = vcmp.gt.s32.totalorder 0, %v338
    %v340 = vsel %vm339, 0, %v338
    %v341 = vsub.s32 32, %v340
    %v342 = vshll.u32 %v333, %v340
    %v343 = vshrl.u32 %v325, %v341
    %v344 = vor.u32 %v342, %v343
    %v345 = vsub.s32 4294967266, %v340
    %v346 = vadd.s32 %v345, 127
    %v347 = vshll.u32 %v346, 23
    %v348 = vor.u32 4788187, %v347
    %v349 = vand.u32 2147483647, %v348
    %v351 = vcvt.s32.f32 %v344
    %v352 = vmul.f32 %v351, %v349
    %v353 = vxor.u32 %v352, 2147483648
    %v354 = vsel %vm271, %v353, %v352
    %v355 = vsub.s32 4, %v331
    %v356 = vsel %vm271, %v355, %v331
    %v357 = vsel %vm270, %v59, %v354
    %v358 = vsel %vm270, 0, %v356
    %v359 = vcosq.f32.pop %v357
    %v360 = vsinq.f32.pop %v357
    %vm361 = vweird.f32 %v59
    %v362 = vadd.s32 %v358, 3
    %v363 = vand.u32 %v362, 3
    %vm364 = vcmp.lt.s32.totalorder %v363, 2
    %vm365 = vcmp.eq.s32.totalorder %v363, 0
    %v366 = vxor.u32 %v360, 2147483648
    %v367 = vsel %vm365, %v359, %v366
    %vm368 = vcmp.eq.s32.totalorder %v363, 2
    %v369 = vxor.u32 %v359, 2147483648
    %v370 = vsel %vm368, %v369, %v360
    %v371 = vsel %vm364, %v367, %v370
    %v372 = vsel %vm361, nan, %v371
    %v373 = vand.u32 2147483647, %v60
    %vm374 = vcmp.le.f32.partialorder %v373, 0.7853982
    %vm375 = vcmp.lt.s32.totalorder %v60, 0
    %v376 = vand.u32 %v60, 2139095040
    %v377 = vshrl.u32 %v376, 23
    %v378 = vsub.s32 %v377, 127
    %v379 = vand.u32 2147483647, %v60
    %v380 = vand.u32 %v379, 8388607
    %v381 = vor.u32 %v380, 8388608
    %v382 = vsub.s32 0, %v381
    %v383 = vadd.s32 %v378, 1
    %vm384 = vcmp.gt.s32.totalorder %v383, 0
    %v385 = vsel %vm384, %v383, 0
    %v386 = vshrl.u32 %v385, 5
    %v387 = vand.u32 %v385, 31
    %v388 = vsub.s32 32, %v387
    %v389 = vshrl.u32 683565275, %v388
    %v390 = vshll.u32 683565275, %v387
    %v391 = vshrl.u32 2475754826, %v388
    %v392 = vor.u32 %v390, %v391
    %v393 = vshll.u32 2475754826, %v387
    %v394 = vshrl.u32 2131351028, %v388
    %v395 = vor.u32 %v393, %v394
    %v396 = vshll.u32 2131351028, %v387
    %v397 = vshrl.u32 2102212464, %v388
    %v398 = vor.u32 %v396, %v397
    %v399 = vshll.u32 2102212464, %v387
    %v400 = vshrl.u32 920167782, %v388
    %v401 = vor.u32 %v399, %v400
    %v402 = vshll.u32 920167782, %v387
    %v403 = vshrl.u32 1326507024, %v388
    %v404 = vor.u32 %v402, %v403
    %vm405 = vcmp.lt.s32.totalorder %v386, 1
    %vm406 = vcmp.lt.s32.totalorder %v386, 2
    %vm407 = vcmp.lt.s32.totalorder %v386, 3
    %vm408 = vcmp.lt.s32.totalorder %v386, 4
    %v409 = vsel %vm405, %v389, %v392
    %v410 = vsel %vm408, %v398, 2102212464
    %v411 = vsel %vm407, %v395, %v410
    %v412 = vsel %vm406, %v409, %v411
    %v413 = vsel %vm405, %v392, %v395
    %v414 = vsel %vm408, %v401, 920167782
    %v415 = vsel %vm407, %v398, %v414
    %v416 = vsel %vm406, %v413, %v415
    %v417 = vsel %vm405, %v395, %v398
    %v418 = vsel %vm408, %v404, 1326507024
    %v419 = vsel %vm407, %v401, %v418
    %v420 = vsel %vm406, %v417, %v419
    %v421 = vshll.u32 %v381, 8
    %v422 = vmul.u32.u64.compose %v421, %v420
    %v423 = vextract.low.u32 %v422
    %v424 = vextract.high.u32 %v422
    %v425 = vmul.u32.u64.compose %v421, %v416
    %v426 = vextract.low.u32 %v425
    %v427 = vextract.high.u32 %v425
    %v428 = vmul.u32 %v421, %v412
    %v429 = vadd.s32 %v424, %v426
    %vm430 = vc.u32 %v424, %v426
    %v431 = vadd.s32 %v427, 1
    %v432 = vsel %vm430, %v431, %v427
    %v433 = vadd.s32 %v428, %v432
    %v434 = vadd.s32 %v433, 536870912
    %v435 = vshrl.u32 %v434, 30
    %v436 = vshll.u32 %v435, 30
    %v437 = vsub.s32 %v433, %v436
    %vm438 = vcmp.lt.s32.totalorder %v437, 0
    %v439 = vsub.s32 0, %v437
    %v440 = vsel %vm438, %v439, %v437
    %v441 = vclz %v440
    %v442 = vsub.s32 %v441, 2
    %vm443 = vcmp.gt.s32.totalorder 0, %v442
    %v444 = vsel %vm443, 0, %v442
    %v445 = vsub.s32 32, %v444
    %v446 = vshll.u32 %v437, %v444
    %v447 = vshrl.u32 %v429, %v445
    %v448 = vor.u32 %v446, %v447
    %v449 = vsub.s32 4294967266, %v444
    %v450 = vadd.s32 %v449, 127
    %v451 = vshll.u32 %v450, 23
    %v452 = vor.u32 4788187, %v451
    %v453 = vand.u32 2147483647, %v452
    %v455 = vcvt.s32.f32 %v448
    %v456 = vmul.f32 %v455, %v453
    %v457 = vxor.u32 %v456, 2147483648
    %v458 = vsel %vm375, %v457, %v456
    %v459 = vsub.s32 4, %v435
    %v460 = vsel %vm375, %v459, %v435
    %v461 = vsel %vm374, %v60, %v458
    %v462 = vsel %vm374, 0, %v460
    %v463 = vcosq.f32.pop %v461
    %v464 = vsinq.f32.pop %v461
    %vm465 = vweird.f32 %v60
    %v466 = vadd.s32 %v462, 3
    %v467 = vand.u32 %v466, 3
    %vm468 = vcmp.lt.s32.totalorder %v467, 2
    %vm469 = vcmp.eq.s32.totalorder %v467, 0
    %v470 = vxor.u32 %v464, 2147483648
    %v471 = vsel %vm469, %v463, %v470
    %vm472 = vcmp.eq.s32.totalorder %v467, 2
    %v473 = vxor.u32 %v463, 2147483648
    %v474 = vsel %vm472, %v473, %v464
    %v475 = vsel %vm468, %v471, %v474
    %v476 = vsel %vm465, nan, %v475
    %477 = vst [vmem:[#allocation2] sm:$0xff] %v164
    %478 = vst [vmem:[#allocation2 + $0x8] sm:$0xff] %v268
    %479 = vst [vmem:[#allocation2 + $0x10] sm:$0xff] %v372
    %480 = vst [vmem:[#allocation2 + $0x18] sm:$0x1] %v476
    // Predicated region
    $region14: #{tpu_custom_call.1} parent=1 // pred_check
      _
    $region15: #{tpu_custom_call.1} parent=1 // pred_check_branch
      %482 = sbr.rel (0) target = $region17
    $region16: #{tpu_custom_call.1} parent=1 // pred_region
      %s484 = ssub.s32 512, 512
      %485 = vsyncadd [#allocation3], %s484
      %s486 = sshll.u32 [#allocation2], 4
      %s487 = int_to_ptr.vmem [resolvable:$true] %s486
      %492 = dma.vmem_to_hbm [thread:$0]  %s487, 512, %s3, [#allocation3], 128, 128, 8
    $region17: #{tpu_custom_call.1} parent=1 // pred_fallthru
      _
    // Predicated region
    $region18: #{tpu_custom_call.1} parent=1 // pred_check
      _
    $region19: #{tpu_custom_call.1} parent=1 // pred_check_branch
      %494 = sbr.rel (0) target = $region21
    $region20: #{tpu_custom_call.1} parent=1 // pred_region
      %495 = dma.done [#allocation3], 512
    $region21: #{tpu_custom_call.1} parent=1 // pred_fallthru
      _
    %496 = vsyncpa [#allocation3], 1

</llo_original>
